<compile_context>
chip_gen: v7x
topology: tpu7x:2x2x1
jax: 0.10.0
libtpu: 0.0.40
codegen_flags: <defaults>
</compile_context>

<pallas_src>
import functools

import jax
import jax.numpy as jnp
from jax import lax
from jax.experimental import pallas as pl
from jax.experimental.pallas import tpu as pltpu


def _vmem_caps():
    """Generation-aware (vmem_limit_bytes, per-step VMEM budget)."""
    try:
        cap = int(pltpu.get_tpu_info().vmem_capacity_bytes)
    except Exception:
        cap = 64 * (1 << 20)            # conservative default (v7x per-TC)
    limit = min(int(cap * 0.85), 112 * (1 << 20))
    budget = int(limit * 0.6)           # headroom for compiler temporaries
    return limit, budget


def _pick_tp(C, H_pad, W, HW, budget):
    """Largest lane tile (multiple of 128, <=4096) whose per-step VMEM fits."""
    hw128 = -(-HW // 128) * 128
    # Rough bytes per output lane: matmul result + weighted product (C*H_pad),
    # the two weighted one-hots + iotas (H_pad + W), in/out double buffers.
    per_lane = 4 * (3 * C * H_pad + 3 * (H_pad + W) + 4 * C + 8)
    fixed = 2 * C * H_pad * W * 4 + (2 << 20)   # double-buffered image block
    tp = 128
    while tp * 2 <= min(4096, hw128) and fixed + per_lane * (tp * 2) <= budget:
        tp *= 2
    return tp


def _warp_kernel(x_ref, src_ref, o_ref, *, H, W, H_pad, C):
    """One (batch, output-pixel-tile) grid step.

    x_ref:   (1, C*H_pad, W) VMEM -- image rows, H zero-padded to H_pad
    src_ref: (1, 2, TP)      VMEM -- absolute source coords (x, y) per pixel
    o_ref:   (1, C, TP)      VMEM
    """
    TP = o_ref.shape[2]

    sx = src_ref[0, 0:1, :]                     # (1, TP)
    sy = src_ref[0, 1:2, :]                     # (1, TP)

    x0f = jnp.floor(sx)
    y0f = jnp.floor(sy)
    wx1 = sx - x0f
    wx0 = 1.0 - wx1
    wy1 = sy - y0f
    wy0 = 1.0 - wy1

    # Clamp before the int cast so extreme flows cannot overflow int32.  A
    # clamped index either misses the [0, W)/[0, H_pad) iota or lands on a
    # zero-padded row, so its contribution is exactly zero ('zeros' padding).
    x0 = jnp.clip(x0f, -2.0, float(W)).astype(jnp.int32)   # (1, TP)
    y0 = jnp.clip(y0f, -2.0, float(H)).astype(jnp.int32)   # (1, TP)

    # Factorized, *weighted* one-hots: the bilinear weight of corner (y, x)
    # is ohy[y, p] * ohx[x, p]; out-of-bounds corners never match -> 0.
    ix = lax.broadcasted_iota(jnp.int32, (W, TP), 0)
    iy = lax.broadcasted_iota(jnp.int32, (H_pad, TP), 0)
    ohx = jnp.where(ix == x0, wx0, 0.0) + jnp.where(ix == x0 + 1, wx1, 0.0)
    ohy = jnp.where(iy == y0, wy0, 0.0) + jnp.where(iy == y0 + 1, wy1, 0.0)

    # One MXU matmul gathers + x-weights both horizontal corners for every
    # image row: (C*H_pad, W) @ (W, TP) -> (C*H_pad, TP).
    tmp = jnp.dot(x_ref[0], ohx, preferred_element_type=jnp.float32)

    # VPU applies the vertical weights and reduces over the row axis.
    out = jnp.sum(tmp.reshape(C, H_pad, TP) * ohy[None, :, :], axis=1)
    o_ref[0] = out.astype(o_ref.dtype)


def warp(x, flow, *, tp=None):
    """x: (N, C, H, W), flow: (N, 2, H, W) -> (N, C, H, W) float32."""
    N, C, H, W = x.shape
    assert flow.shape == (N, 2, H, W)
    HW = H * W
    H_pad = -(-H // 8) * 8                      # sublane-align the row axis

    limit, budget = _vmem_caps()
    if tp is None:
        tp = _pick_tp(C, H_pad, W, HW, budget)
    assert tp % 128 == 0
    HW_pad = -(-HW // tp) * tp
    n_pt = HW_pad // tp

    xf = x.astype(jnp.float32)
    if H_pad != H:
        xf = jnp.pad(xf, ((0, 0), (0, 0), (0, H_pad - H), (0, 0)))
    xf = xf.reshape(N, C * H_pad, W)

    # Absorb the output pixel coordinates into the flow so the kernel gets
    # absolute source coordinates (no per-step iota / integer div-mod).
    gx = jnp.arange(W, dtype=jnp.float32)[None, None, :]
    gy = jnp.arange(H, dtype=jnp.float32)[None, :, None]
    src = jnp.stack([flow[:, 0].astype(jnp.float32) + gx,
                     flow[:, 1].astype(jnp.float32) + gy], axis=1)
    src = src.reshape(N, 2, HW)
    if HW_pad != HW:
        # Pad with -2: padded output pixels compute to 0 and are sliced off.
        src = jnp.pad(src, ((0, 0), (0, 0), (0, HW_pad - HW)),
                      constant_values=-2.0)

    # TODO(synk): for bounded |flow|, a scalar-prefetched per-tile row window
    # (data-dependent index_map on the image rows) would further cut the
    # one-hot extents and MXU MACs for very large images.
    out = pl.pallas_call(
        functools.partial(_warp_kernel, H=H, W=W, H_pad=H_pad, C=C),
        out_shape=jax.ShapeDtypeStruct((N, C, HW_pad), jnp.float32),
        grid_spec=pltpu.PrefetchScalarGridSpec(
            num_scalar_prefetch=0,
            grid=(N, n_pt),
            in_specs=[
                # Image block index only changes with n -> re-DMA'd once per
                # batch and resident across all pixel tiles of that batch.
                # TODO(synk): pipeline_mode=pl.Buffered(1) would halve this
                # block's VMEM once single-buffered inputs are fully robust.
                pl.BlockSpec((1, C * H_pad, W), lambda n, j: (n, 0, 0)),
                pl.BlockSpec((1, 2, tp), lambda n, j: (n, 0, j)),
            ],
            out_specs=pl.BlockSpec((1, C, tp), lambda n, j: (n, 0, j)),
        ),
        compiler_params=pltpu.CompilerParams(
            dimension_semantics=("parallel", "parallel"),
            vmem_limit_bytes=limit),
    )(xf, src)
    return out[:, :, :HW].reshape(N, C, H, W)


def warp_ref(x, flow):
    """Pure-JAX reference (bilinear warp, zero padding)."""
    N, C, H, W = x.shape
    ys = jnp.arange(H, dtype=jnp.float32)[:, None]
    xs = jnp.arange(W, dtype=jnp.float32)[None, :]
    sx = xs + flow[:, 0]  # (N, H, W)
    sy = ys + flow[:, 1]

    x0 = jnp.floor(sx)
    y0 = jnp.floor(sy)
    x1 = x0 + 1.0
    y1 = y0 + 1.0
    wx1 = sx - x0
    wx0 = 1.0 - wx1
    wy1 = sy - y0
    wy0 = 1.0 - wy1

    xflat = x.reshape(N, C, H * W)

    def gather(xf_, yf_, w):
        valid = (xf_ >= 0.0) & (xf_ <= W - 1.0) & (yf_ >= 0.0) & (yf_ <= H - 1.0)
        xi = jnp.clip(xf_, 0.0, W - 1.0).astype(jnp.int32)
        yi = jnp.clip(yf_, 0.0, H - 1.0).astype(jnp.int32)
        idx = (yi * W + xi).reshape(N, H * W)
        v = jax.vmap(lambda xn, idxn: xn[:, idxn])(xflat, idx)  # (N, C, HW)
        w_eff = (w * valid).reshape(N, 1, H * W)
        return v * w_eff

    out = (gather(x0, y0, wx0 * wy0)
           + gather(x1, y0, wx1 * wy0)
           + gather(x0, y1, wx0 * wy1)
           + gather(x1, y1, wx1 * wy1))
    return out.reshape(N, C, H, W)


if __name__ == "__main__":
    key = jax.random.PRNGKey(0)
    k1, k2, k3 = jax.random.split(key, 3)

    def check(xa, fa, atol=2e-4):
        out = jax.block_until_ready(warp(xa, fa))
        ref = warp_ref(xa, fa)
        assert out.shape == xa.shape
        assert jnp.allclose(out, ref, atol=atol, rtol=atol), (
            f"max abs err {float(jnp.max(jnp.abs(out - ref)))}")

    # Moderate flow.
    N, C, H, W = 2, 4, 16, 16
    x = jax.random.normal(k1, (N, C, H, W), dtype=jnp.float32)
    flow = jax.random.normal(k2, (N, 2, H, W), dtype=jnp.float32) * 3.0
    check(x, flow)

    # Large flow: samples land just outside / far outside every border,
    # exercising the zero-padding ('zeros') path.
    flow_big = jax.random.normal(k3, (N, 2, H, W), dtype=jnp.float32) * 20.0
    check(x, flow_big)

    # Rectangular image, single lane tile (HW == 128).
    x2 = jax.random.normal(k1, (1, 4, 8, 16), dtype=jnp.float32)
    f2 = jax.random.normal(k2, (1, 2, 8, 16), dtype=jnp.float32) * 2.5
    check(x2, f2)

    # Unaligned shape: H not a multiple of 8 and H*W not a multiple of 128,
    # exercising the row-padding and pixel-padding paths.
    x3 = jax.random.normal(k1, (1, 3, 10, 12), dtype=jnp.float32)
    f3 = jax.random.normal(k2, (1, 2, 10, 12), dtype=jnp.float32) * 2.0
    check(x3, f3)

    print("KERNEL_OK")
</pallas_src>

<mosaic_0001>
module attributes {stable_mosaic.version = 11 : i64} {
  func.func @_warp_kernel(%arg0: i32, %arg1: i32, %arg2: memref<1x64x16xf32, #tpu.memory_space<vmem>>, %arg3: memref<1x2x256xf32, #tpu.memory_space<vmem>>, %arg4: memref<1x4x256xf32, #tpu.memory_space<vmem>>) attributes {dimension_semantics = [#tpu.dimension_semantics<parallel>, #tpu.dimension_semantics<parallel>], iteration_bounds = array<i64: 2, 1>, scalar_prefetch = 0 : i64, scratch_operands = 0 : i64, tpu.core_type = #tpu.core_type<tc>, window_params = [{transform_indices = @transform_0, window_bounds = array<i64: 1, 64, 16>}, {transform_indices = @transform_1, window_bounds = array<i64: 1, 2, 256>}, {transform_indices = @transform_2, window_bounds = array<i64: 1, 4, 256>}]} {
    %c0 = arith.constant 0 : index
    %c0_0 = arith.constant 0 : index
    %c0_1 = arith.constant 0 : index
    %0 = vector.load %arg3[%c0, %c0_0, %c0_1] : memref<1x2x256xf32, #tpu.memory_space<vmem>>, vector<1x1x256xf32>
    %1 = vector.shape_cast %0 : vector<1x1x256xf32> to vector<1x256xf32>
    %c0_2 = arith.constant 0 : index
    %c1 = arith.constant 1 : index
    %c0_3 = arith.constant 0 : index
    %2 = vector.load %arg3[%c0_2, %c1, %c0_3] : memref<1x2x256xf32, #tpu.memory_space<vmem>>, vector<1x1x256xf32>
    %3 = vector.shape_cast %2 : vector<1x1x256xf32> to vector<1x256xf32>
    %4 = math.floor %1 : vector<1x256xf32>
    %5 = math.floor %3 : vector<1x256xf32>
    %6 = arith.subf %1, %4 : vector<1x256xf32>
    %cst = arith.constant 1.000000e+00 : f32
    %7 = vector.broadcast %cst : f32 to vector<1x256xf32>
    %8 = arith.subf %7, %6 : vector<1x256xf32>
    %9 = arith.subf %3, %5 : vector<1x256xf32>
    %cst_4 = arith.constant 1.000000e+00 : f32
    %10 = vector.broadcast %cst_4 : f32 to vector<1x256xf32>
    %11 = arith.subf %10, %9 : vector<1x256xf32>
    %cst_5 = arith.constant -2.000000e+00 : f32
    %cst_6 = arith.constant 1.600000e+01 : f32
    %12 = vector.broadcast %cst_5 : f32 to vector<1x256xf32>
    %13 = arith.maximumf %12, %4 : vector<1x256xf32>
    %14 = vector.broadcast %cst_6 : f32 to vector<1x256xf32>
    %15 = arith.minimumf %14, %13 : vector<1x256xf32>
    %16 = arith.fptosi %15 : vector<1x256xf32> to vector<1x256xi32>
    %cst_7 = arith.constant -2.000000e+00 : f32
    %cst_8 = arith.constant 1.600000e+01 : f32
    %17 = vector.broadcast %cst_7 : f32 to vector<1x256xf32>
    %18 = arith.maximumf %17, %5 : vector<1x256xf32>
    %19 = vector.broadcast %cst_8 : f32 to vector<1x256xf32>
    %20 = arith.minimumf %19, %18 : vector<1x256xf32>
    %21 = arith.fptosi %20 : vector<1x256xf32> to vector<1x256xi32>
    %22 = tpu.iota {dimensions = array<i32: 0>} : vector<16x256xi32>
    %23 = tpu.iota {dimensions = array<i32: 0>} : vector<16x256xi32>
    %24 = vector.broadcast %16 : vector<1x256xi32> to vector<16x256xi32>
    %25 = arith.cmpi eq, %22, %24 : vector<16x256xi32>
    %cst_9 = arith.constant 0.000000e+00 : f32
    %26 = vector.shape_cast %8 : vector<1x256xf32> to vector<1x256xf32>
    %27 = vector.broadcast %26 : vector<1x256xf32> to vector<16x256xf32>
    %28 = vector.broadcast %cst_9 : f32 to vector<16x256xf32>
    %29 = arith.select %25, %27, %28 : vector<16x256xi1>, vector<16x256xf32>
    %c1_i32 = arith.constant 1 : i32
    %30 = vector.broadcast %c1_i32 : i32 to vector<1x256xi32>
    %31 = arith.addi %16, %30 : vector<1x256xi32>
    %32 = vector.broadcast %31 : vector<1x256xi32> to vector<16x256xi32>
    %33 = arith.cmpi eq, %22, %32 : vector<16x256xi32>
    %cst_10 = arith.constant 0.000000e+00 : f32
    %34 = vector.shape_cast %6 : vector<1x256xf32> to vector<1x256xf32>
    %35 = vector.broadcast %34 : vector<1x256xf32> to vector<16x256xf32>
    %36 = vector.broadcast %cst_10 : f32 to vector<16x256xf32>
    %37 = arith.select %33, %35, %36 : vector<16x256xi1>, vector<16x256xf32>
    %38 = arith.addf %29, %37 : vector<16x256xf32>
    %39 = vector.broadcast %21 : vector<1x256xi32> to vector<16x256xi32>
    %40 = arith.cmpi eq, %23, %39 : vector<16x256xi32>
    %cst_11 = arith.constant 0.000000e+00 : f32
    %41 = vector.shape_cast %11 : vector<1x256xf32> to vector<1x256xf32>
    %42 = vector.broadcast %41 : vector<1x256xf32> to vector<16x256xf32>
    %43 = vector.broadcast %cst_11 : f32 to vector<16x256xf32>
    %44 = arith.select %40, %42, %43 : vector<16x256xi1>, vector<16x256xf32>
    %c1_i32_12 = arith.constant 1 : i32
    %45 = vector.broadcast %c1_i32_12 : i32 to vector<1x256xi32>
    %46 = arith.addi %21, %45 : vector<1x256xi32>
    %47 = vector.broadcast %46 : vector<1x256xi32> to vector<16x256xi32>
    %48 = arith.cmpi eq, %23, %47 : vector<16x256xi32>
    %cst_13 = arith.constant 0.000000e+00 : f32
    %49 = vector.shape_cast %9 : vector<1x256xf32> to vector<1x256xf32>
    %50 = vector.broadcast %49 : vector<1x256xf32> to vector<16x256xf32>
    %51 = vector.broadcast %cst_13 : f32 to vector<16x256xf32>
    %52 = arith.select %48, %50, %51 : vector<16x256xi1>, vector<16x256xf32>
    %53 = arith.addf %44, %52 : vector<16x256xf32>
    %c0_14 = arith.constant 0 : index
    %c0_15 = arith.constant 0 : index
    %c0_16 = arith.constant 0 : index
    %54 = vector.load %arg2[%c0_14, %c0_15, %c0_16] : memref<1x64x16xf32, #tpu.memory_space<vmem>>, vector<1x64x16xf32>
    %55 = vector.shape_cast %54 : vector<1x64x16xf32> to vector<64x16xf32>
    %cst_17 = arith.constant dense<0.000000e+00> : vector<64x256xf32>
    %56 = tpu.matmul %55, %38, %cst_17 {dimension_numbers = #tpu.dot_dimension_numbers<[1], [0], [0], [1], [0, 0, 1, 1], [], []>} : vector<64x16xf32>, vector<16x256xf32>, vector<64x256xf32> -> vector<64x256xf32>
    %57 = vector.shape_cast %56 : vector<64x256xf32> to vector<4x16x256xf32>
    %58 = vector.shape_cast %53 : vector<16x256xf32> to vector<1x16x256xf32>
    %59 = vector.broadcast %58 : vector<1x16x256xf32> to vector<4x16x256xf32>
    %60 = arith.mulf %57, %59 : vector<4x16x256xf32>
    %cst_18 = arith.constant dense<0.000000e+00> : vector<4x256xf32>
    %61 = vector.multi_reduction <add>, %60, %cst_18 [1] : vector<4x16x256xf32> to vector<4x256xf32>
    %c0_19 = arith.constant 0 : index
    %c0_20 = arith.constant 0 : index
    %c0_21 = arith.constant 0 : index
    %62 = vector.load %arg4[%c0_19, %c0_20, %c0_21] : memref<1x4x256xf32, #tpu.memory_space<vmem>>, vector<1x4x256xf32>
    %63 = vector.shape_cast %62 : vector<1x4x256xf32> to vector<4x256xf32>
    %64 = vector.shape_cast %61 : vector<4x256xf32> to vector<1x4x256xf32>
    tpu.vector_store %arg4[%c0_19, %c0_20, %c0_21], %64 {strides = array<i32>} : memref<1x4x256xf32, #tpu.memory_space<vmem>>, vector<1x4x256xf32>,
    return
  }
  func.func @transform_0(%arg0: i32, %arg1: i32) -> (i32, i32, i32) {
    %c0_i32 = arith.constant 0 : i32
    %c0_i32_0 = arith.constant 0 : i32
    %c0_i32_1 = arith.constant 0 : i32
    return %arg0, %c0_i32, %c0_i32_0 : i32, i32, i32
  }
  func.func @transform_1(%arg0: i32, %arg1: i32) -> (i32, i32, i32) {
    %c0_i32 = arith.constant 0 : i32
    %c0_i32_0 = arith.constant 0 : i32
    return %arg0, %c0_i32, %arg1 : i32, i32, i32
  }
  func.func @transform_2(%arg0: i32, %arg1: i32) -> (i32, i32, i32) {
    %c0_i32 = arith.constant 0 : i32
    %c0_i32_0 = arith.constant 0 : i32
    return %arg0, %c0_i32, %arg1 : i32, i32, i32
  }
}

</mosaic_0001>

<llo_original>
// kernel: tpu_custom_call.1
$region0: #{tpu_custom_call.1}
  #allocation0 [shape = 'u32[]', space=smem, size = 0x4, offset = 0x4, fixed_abs, tag = 'smem constant byte address 0x4 - core index']
  #allocation1 [shape = 'u32[144,128]{1,0:T(1,128)}', space=vmem, size = 0x12000, scoped, tag = 'internal scratch']
  %s0 = inlined_call_operand.vmem [shape: f32[2,64,16], index: 0, kind: input, shape index: {}]
  %s1 = inlined_call_operand.vmem [shape: f32[2,2,256], index: 1, kind: input, shape index: {}]
  %s2 = inlined_call_operand.hbm [shape: f32[2,4,256], index: 2, kind: output, shape index: {}]
  %s3 = sld [smem:[#allocation0]]
  $region41: #{tpu_custom_call.1} parent=0
    _
  %s5 = ssub.s32 1, %s3
  %s6 = scalar_select 0, %s5, %s3
  $region1: #{tpu_custom_call.1} parent=0
    #allocation2 [shape = 'u8[8192]{0}', space=vmem, size = 0x2000, scoped, tag = 'output window, operand 0']
    #allocation3 [shape = 's32[2]{0}', space=sflag, size = 0x8, scoped, tag = 'scoped memory for tpu_custom_call.1']
    %7 = vsyncpa [#allocation3], 0
    %s8 = scalar_lea.sflag [#allocation3], 1
    %9 = vsyncpa %s8, 0
    loop: start=0, step=1, limit=4
    $region2: #{tpu_custom_call.1} parent=1 // loop_pre_header
      _
    $region3: #{tpu_custom_call.1} parent=1 // loop_header
      %s11 = sphi 0, %s15
      %p12 = scmp.ge.s32.totalorder %s11, 4
      %s18 = sphi 0, %s30
      %s19 = sphi 0, %s26
      %s20 = sphi 0, %s18
      %s21 = sphi 0, %s19
      %s22 = sphi 0, %s20
      %s23 = sphi 0, %s21
      %s33 = sphi 0, %s35
      %s36 = sphi 0, %s33
      %s37 = sphi 0, %s36
      %s53 = sphi 0, %s37
      %s61 = sphi 0, %s63
      %s64 = sphi 0, %s61
      %s65 = sphi 0, %s64
      %s81 = sphi 0, %s65
      %s89 = sphi 0, %s91
      %s92 = sphi 0, %s89
      %s93 = sphi 0, %s92
      %s109 = sphi 0, %s93
    $region4: #{tpu_custom_call.1} parent=1 // loop_header_branch
      %14 = sbr.rel (%p12) target = $region8
    $region5: #{tpu_custom_call.1} parent=1 // loop_body
      %s16 = ssub.s32 %s11, 1
      %s17 = ssub.s32 %s11, 2
      %s24 = sadd.s32 1, %s19
      %p25 = scmp.ge.s32.totalorder %s24, 1
      %s26 = scalar_select %p25, 0, %s24
      %s27 = sadd.s32 1, %s18
      %s28 = scalar_select %p25, %s27, %s18
      %p29 = scmp.ge.s32.totalorder %s28, 2
      %s30 = scalar_select %p29, 0, %s28
      %s31 = ssub.s32 %s18, %s30
      %p32 = scmp.eq.s32.totalorder %s31, 0
      %s34 = sadd.s32 %s33, 1
      %s35 = scalar_select %p32, %s33, %s34
      %p38 = pneg %p32
      %p39 = scmp.eq.s32.totalorder %s11, 1
      %p40 = por %p38, %p39
      %p41 = scmp.ne.s32.totalorder %s33, %s36
      %p42 = scmp.eq.s32.totalorder %s11, 0
      %p43 = por %p41, %p42
      %p44 = scmp.ne.s32.totalorder %s33, %s36
      %p45 = scmp.eq.s32.totalorder %s16, 1
      %p46 = por %p44, %p45
      %p47 = scmp.ne.s32.totalorder %s36, %s37
      %p48 = scmp.eq.s32.totalorder %s16, 0
      %p49 = por %p47, %p48
      %p50 = scmp.ne.s32.totalorder %s36, %s37
      %p51 = scmp.eq.s32.totalorder %s17, 1
      %p52 = por %p50, %p51
      %p54 = scmp.ne.s32.totalorder %s37, %s53
      %p55 = scmp.eq.s32.totalorder %s17, 0
      %p56 = por %p54, %p55
      %s57 = ssub.s32 %s18, %s30
      %s58 = ssub.s32 %s19, %s26
      %s59 = sor.u32 %s57, %s58
      %p60 = scmp.eq.s32.totalorder %s59, 0
      %s62 = sadd.s32 %s61, 1
      %s63 = scalar_select %p60, %s61, %s62
      %p66 = pneg %p60
      %p67 = scmp.eq.s32.totalorder %s11, 1
      %p68 = por %p66, %p67
      %p69 = scmp.ne.s32.totalorder %s61, %s64
      %p70 = scmp.eq.s32.totalorder %s11, 0
      %p71 = por %p69, %p70
      %p72 = scmp.ne.s32.totalorder %s61, %s64
      %p73 = scmp.eq.s32.totalorder %s16, 1
      %p74 = por %p72, %p73
      %p75 = scmp.ne.s32.totalorder %s64, %s65
      %p76 = scmp.eq.s32.totalorder %s16, 0
      %p77 = por %p75, %p76
      %p78 = scmp.ne.s32.totalorder %s64, %s65
      %p79 = scmp.eq.s32.totalorder %s17, 1
      %p80 = por %p78, %p79
      %p82 = scmp.ne.s32.totalorder %s65, %s81
      %p83 = scmp.eq.s32.totalorder %s17, 0
      %p84 = por %p82, %p83
      %s85 = ssub.s32 %s18, %s30
      %s86 = ssub.s32 %s19, %s26
      %s87 = sor.u32 %s85, %s86
      %p88 = scmp.eq.s32.totalorder %s87, 0
      %s90 = sadd.s32 %s89, 1
      %s91 = scalar_select %p88, %s89, %s90
      %p94 = pneg %p88
      %p95 = scmp.eq.s32.totalorder %s11, 1
      %p96 = por %p94, %p95
      %p97 = scmp.ne.s32.totalorder %s89, %s92
      %p98 = scmp.eq.s32.totalorder %s11, 0
      %p99 = por %p97, %p98
      %p100 = scmp.ne.s32.totalorder %s89, %s92
      %p101 = scmp.eq.s32.totalorder %s16, 1
      %p102 = por %p100, %p101
      %p103 = scmp.ne.s32.totalorder %s92, %s93
      %p104 = scmp.eq.s32.totalorder %s16, 0
      %p105 = por %p103, %p104
      %p106 = scmp.ne.s32.totalorder %s92, %s93
      %p107 = scmp.eq.s32.totalorder %s17, 1
      %p108 = por %p106, %p107
      %p110 = scmp.ne.s32.totalorder %s93, %s109
      %p111 = scmp.eq.s32.totalorder %s17, 0
      %p112 = por %p110, %p111
      %p113 = scmp.le.s32.totalorder 1, %s11
      %p114 = scmp.lt.s32.totalorder %s11, 3
      %p115 = pnand %p113, %p114
      %p116 = pneg %p115
      // Predicated region
      $region9: #{tpu_custom_call.1} parent=5 // pred_check
        _
      $region10: #{tpu_custom_call.1} parent=5 // pred_check_branch
        %118 = sbr.rel (%p115) target = $region12
      $region11: #{tpu_custom_call.1} parent=5 // pred_region
        %s119 = ssub.s32 %s11, 1
      $region12: #{tpu_custom_call.1} parent=5 // pred_fallthru
        _
      %p120 = scmp.lt.s32.totalorder %s11, 2
      // Predicated region
      $region13: #{tpu_custom_call.1} parent=5 // pred_check
        %p121 = pneg %p120
      $region14: #{tpu_custom_call.1} parent=5 // pred_check_branch
        %123 = sbr.rel (%p121) target = $region16
      $region15: #{tpu_custom_call.1} parent=5 // pred_region
        // Predicated region
        $region17: #{tpu_custom_call.1} parent=15 // pred_check
          %p124 = pneg %p43
        $region18: #{tpu_custom_call.1} parent=15 // pred_check_branch
          %126 = sbr.rel (%p124) target = $region20
        $region19: #{tpu_custom_call.1} parent=15 // pred_region
          %p127 = scmp.lt.s32.totalorder %s18, 1
          %s128 = scalar_select %p127, %s18, 1
          %s129 = smul.addr %s128, 8
          %s130 = smul.addr %s129, 8
          %s131 = scalar_lea.vmem %s0, %s130
        $region20: #{tpu_custom_call.1} parent=15 // pred_fallthru
          _
        // Predicated region
        $region21: #{tpu_custom_call.1} parent=15 // pred_check
          %p132 = pneg %p71
        $region22: #{tpu_custom_call.1} parent=15 // pred_check_branch
          %134 = sbr.rel (%p132) target = $region24
        $region23: #{tpu_custom_call.1} parent=15 // pred_region
          %s135 = smul.u32 2, %s19
          %p136 = scmp.lt.s32.totalorder %s18, 1
          %s137 = scalar_select %p136, %s18, 1
          %p138 = scmp.lt.s32.totalorder %s135, 1
          %s139 = scalar_select %p138, %s135, 1
          %s140 = smul.addr %s137, 2
          %s141 = sadd.s32 %s139, %s140
          %s142 = smul.addr %s141, 2
          %s143 = scalar_lea.vmem %s1, %s142
          %s144 = smul.u32 2, %s19
        $region24: #{tpu_custom_call.1} parent=15 // pred_fallthru
          _
      $region16: #{tpu_custom_call.1} parent=5 // pred_fallthru
        _
      %p145 = scmp.le.s32.totalorder 1, %s11
      %p146 = scmp.lt.s32.totalorder %s11, 3
      %p147 = pnand %p145, %p146
      %p148 = pneg %p147
      // Predicated region
      $region25: #{tpu_custom_call.1} parent=5 // pred_check
        _
      $region26: #{tpu_custom_call.1} parent=5 // pred_check_branch
        %150 = sbr.rel (%p147) target = $region28
      $region27: #{tpu_custom_call.1} parent=5 // pred_region
        %s151 = ssub.s32 %s11, 1
        %p152 = scmp.lt.s32.totalorder %s20, 1
        %s153 = scalar_select %p152, %s20, 1
        %s154 = smul.addr %s153, 8
        %s155 = smul.addr %s154, 8
        %s156 = scalar_lea.vmem %s0, %s155
        %p157 = pneg %p49
        %p158 = pneg %p46
        %s159 = smul.u32 2, %s21
        %p160 = scmp.lt.s32.totalorder %s20, 1
        %s161 = scalar_select %p160, %s20, 1
        %p162 = scmp.lt.s32.totalorder %s159, 1
        %s163 = scalar_select %p162, %s159, 1
        %s164 = smul.addr %s161, 2
        %s165 = sadd.s32 %s163, %s164
        %s166 = smul.addr %s165, 2
        %s167 = scalar_lea.vmem %s1, %s166
        %p168 = pneg %p77
        %p169 = pneg %p74
        %p170 = pneg %p105
        %p171 = pneg %p102
        %s172 = sand.u32 %s92, 1
        %s173 = scalar_lea.sflag [#allocation3], %s172
        %s174 = sand.u32 %s92, 1
        %s175 = smul.addr %s174, 8
        %s176 = scalar_lea.vmem [#allocation2], %s175
        %p177 = scmp.lt.s32.totalorder %s20, 1
        %s178 = scalar_select %p177, %s20, 1
        %s179 = smul.addr %s178, 8
        %s180 = smul.addr %s179, 8
        %s181 = scalar_lea.vmem %s0, %s180
        %s182 = smul.u32 2, %s21
        %p183 = scmp.lt.s32.totalorder %s20, 1
        %s184 = scalar_select %p183, %s20, 1
        %p185 = scmp.lt.s32.totalorder %s182, 1
        %s186 = scalar_select %p185, %s182, 1
        %s187 = smul.addr %s184, 2
        %s188 = sadd.s32 %s186, %s187
        %s189 = smul.addr %s188, 2
        %s190 = scalar_lea.vmem %s1, %s189
        %s191 = smul.u32 2, %s21
        %s192 = smul.u32 2, %s21
        %v193 = vld [vmem:[%s190] ss:$2 sm:$0x3]
        %s194 = scalar_lea.vmem %s190, 1
        %v195 = vld [vmem:[%s194] ss:$2 sm:$0x3]
        %v196 = vfloor.f32 %v193
        %v197 = vfloor.f32 %v195
        %v198 = vsub.f32 %v193, %v196
        %v199 = vsub.f32 1.0, %v198
        %v200 = vsub.f32 %v195, %v197
        %v201 = vsub.f32 1.0, %v200
        %v202 = vmax.f32 %v196, -2.0
        %v203 = vmin.f32 %v202, 16.0
        %v204 = vcvt.f32.s32.to.zero.pseudo %v203
        %v205 = vmax.f32 %v197, -2.0
        %v206 = vmin.f32 %v205, 16.0
        %v207 = vcvt.f32.s32.to.zero.pseudo %v206
        %v208 = vlaneseq
        %v209 = vshrl.u32 %v208, 7
        %v210 = vadd.s32 %v209, 8
        %v211 = vlaneseq
        %v212 = vshrl.u32 %v211, 7
        %v213 = vsub.s32 0, %v212
        %v214 = vrot.slane %v204, %v213
        %v215 = vlaneseq
        %v216 = vshrl.u32 %v215, 7
        %v217 = vsub.s32 1, %v216
        %v218 = vrot.slane %v204, %v217
        %vm219 = vcmp.eq.s32.totalorder %v209, %v214
        %vm220 = vcmp.eq.s32.totalorder %v209, %v218
        %vm221 = vcmp.eq.s32.totalorder %v210, %v214
        %vm222 = vcmp.eq.s32.totalorder %v210, %v218
        %v224 = vlaneseq
        %v225 = vshrl.u32 %v224, 7
        %v226 = vsub.s32 0, %v225
        %v227 = vrot.slane %v199, %v226
        %v228 = vlaneseq
        %v229 = vshrl.u32 %v228, 7
        %v230 = vsub.s32 1, %v229
        %v231 = vrot.slane %v199, %v230
        %v234 = vsel %vm219, %v227, 0.0
        %v235 = vsel %vm220, %v231, 0.0
        %v236 = vsel %vm221, %v227, 0.0
        %v237 = vsel %vm222, %v231, 0.0
        %v238 = vadd.s32 %v204, 1
        %v239 = vlaneseq
        %v240 = vshrl.u32 %v239, 7
        %v241 = vsub.s32 0, %v240
        %v242 = vrot.slane %v238, %v241
        %v243 = vlaneseq
        %v244 = vshrl.u32 %v243, 7
        %v245 = vsub.s32 1, %v244
        %v246 = vrot.slane %v238, %v245
        %vm247 = vcmp.eq.s32.totalorder %v209, %v242
        %vm248 = vcmp.eq.s32.totalorder %v209, %v246
        %vm249 = vcmp.eq.s32.totalorder %v210, %v242
        %vm250 = vcmp.eq.s32.totalorder %v210, %v246
        %v252 = vlaneseq
        %v253 = vshrl.u32 %v252, 7
        %v254 = vsub.s32 0, %v253
        %v255 = vrot.slane %v198, %v254
        %v256 = vlaneseq
        %v257 = vshrl.u32 %v256, 7
        %v258 = vsub.s32 1, %v257
        %v259 = vrot.slane %v198, %v258
        %v262 = vsel %vm247, %v255, 0.0
        %v263 = vsel %vm248, %v259, 0.0
        %v264 = vsel %vm249, %v255, 0.0
        %v265 = vsel %vm250, %v259, 0.0
        %v266 = vadd.f32 %v234, %v262
        %v267 = vadd.f32 %v235, %v263
        %v268 = vadd.f32 %v236, %v264
        %v269 = vadd.f32 %v237, %v265
        %v270 = vlaneseq
        %v271 = vshrl.u32 %v270, 7
        %v272 = vsub.s32 0, %v271
        %v273 = vrot.slane %v207, %v272
        %v274 = vlaneseq
        %v275 = vshrl.u32 %v274, 7
        %v276 = vsub.s32 1, %v275
        %v277 = vrot.slane %v207, %v276
        %vm278 = vcmp.eq.s32.totalorder %v209, %v273
        %vm279 = vcmp.eq.s32.totalorder %v209, %v277
        %vm280 = vcmp.eq.s32.totalorder %v210, %v273
        %vm281 = vcmp.eq.s32.totalorder %v210, %v277
        %v283 = vlaneseq
        %v284 = vshrl.u32 %v283, 7
        %v285 = vsub.s32 0, %v284
        %v286 = vrot.slane %v201, %v285
        %v287 = vlaneseq
        %v288 = vshrl.u32 %v287, 7
        %v289 = vsub.s32 1, %v288
        %v290 = vrot.slane %v201, %v289
        %v293 = vsel %vm278, %v286, 0.0
        %v294 = vsel %vm279, %v290, 0.0
        %v295 = vsel %vm280, %v286, 0.0
        %v296 = vsel %vm281, %v290, 0.0
        %v297 = vadd.s32 %v207, 1
        %v298 = vlaneseq
        %v299 = vshrl.u32 %v298, 7
        %v300 = vsub.s32 0, %v299
        %v301 = vrot.slane %v297, %v300
        %v302 = vlaneseq
        %v303 = vshrl.u32 %v302, 7
        %v304 = vsub.s32 1, %v303
        %v305 = vrot.slane %v297, %v304
        %vm306 = vcmp.eq.s32.totalorder %v209, %v301
        %vm307 = vcmp.eq.s32.totalorder %v209, %v305
        %vm308 = vcmp.eq.s32.totalorder %v210, %v301
        %vm309 = vcmp.eq.s32.totalorder %v210, %v305
        %v311 = vlaneseq
        %v312 = vshrl.u32 %v311, 7
        %v313 = vsub.s32 0, %v312
        %v314 = vrot.slane %v200, %v313
        %v315 = vlaneseq
        %v316 = vshrl.u32 %v315, 7
        %v317 = vsub.s32 1, %v316
        %v318 = vrot.slane %v200, %v317
        %v321 = vsel %vm306, %v314, 0.0
        %v322 = vsel %vm307, %v318, 0.0
        %v323 = vsel %vm308, %v314, 0.0
        %v324 = vsel %vm309, %v318, 0.0
        %v325 = vadd.f32 %v293, %v321
        %v326 = vadd.f32 %v294, %v322
        %v327 = vadd.f32 %v295, %v323
        %v328 = vadd.f32 %v296, %v324
        %v329 = vld [vmem:[%s181] sm:$0xff]
        %v330 = vld [vmem:[%s181 + $0x8] sm:$0xff]
        %v331 = vld [vmem:[%s181 + $0x10] sm:$0xff]
        %v332 = vld [vmem:[%s181 + $0x18] sm:$0xff]
        %v333 = vld [vmem:[%s181 + $0x20] sm:$0xff]
        %v334 = vld [vmem:[%s181 + $0x28] sm:$0xff]
        %v335 = vld [vmem:[%s181 + $0x30] sm:$0xff]
        %v336 = vld [vmem:[%s181 + $0x38] sm:$0xff]
        %vm337 = vcmask 130048
        %v339 = vsel %vm337, %v329, 0
        %v342 = vsel %vm337, %v330, 0
        %v345 = vsel %vm337, %v331, 0
        %v348 = vsel %vm337, %v332, 0
        %v351 = vsel %vm337, %v333, 0
        %v354 = vsel %vm337, %v334, 0
        %v357 = vsel %vm337, %v335, 0
        %v360 = vsel %vm337, %v336, 0
        %362 = vmatprep.subr.mxu0 %v267
        %363 = vmatpush1.msra.mxu0 %v266
        %364 = vmatprep.subr.mxu0 %v269
        %365 = vmatpush1.msra.mxu0 %v268
        %366 = vmatprep.subr.mxu0 0.0
        %367 = vmatpush1.msra.mxu0 0.0
        %368 = vmatprep.subr.mxu0 0.0
        %369 = vmatpush1.msra.mxu0 0.0
        %370 = vmatprep.subr.mxu0 0.0
        %371 = vmatpush1.msra.mxu0 0.0
        %372 = vmatprep.subr.mxu0 0.0
        %373 = vmatpush1.msra.mxu0 0.0
        %374 = vmatprep.subr.mxu0 0.0
        %375 = vmatpush1.msra.mxu0 0.0
        %376 = vmatprep.subr.mxu0 0.0
        %377 = vmatpush1.msra.mxu0 0.0
        %378 = vmatprep.subr.mxu0 0.0
        %379 = vmatpush1.msra.mxu0 0.0
        %380 = vmatprep.subr.mxu0 0.0
        %381 = vmatpush1.msra.mxu0 0.0
        %382 = vmatprep.subr.mxu0 0.0
        %383 = vmatpush1.msra.mxu0 0.0
        %384 = vmatprep.subr.mxu0 0.0
        %385 = vmatpush1.msra.mxu0 0.0
        %386 = vmatprep.subr.mxu0 0.0
        %387 = vmatpush1.msra.mxu0 0.0
        %388 = vmatprep.subr.mxu0 0.0
        %389 = vmatpush1.msra.mxu0 0.0
        %390 = vmatprep.subr.mxu0 0.0
        %391 = vmatpush1.msra.mxu0 0.0
        %392 = vmatprep.subr.mxu0 0.0
        %393 = vmatpush1.msra.mxu0 0.0
        %394 = vmatprep.subr.mxu0 0.0
        %395 = vmatpush1.msra.mxu0 0.0
        %396 = vmatprep.subr.mxu0 0.0
        %397 = vmatpush1.msra.mxu0 0.0
        %398 = vmatprep.subr.mxu0 0.0
        %399 = vmatpush1.msra.mxu0 0.0
        %400 = vmatprep.subr.mxu0 0.0
        %401 = vmatpush1.msra.mxu0 0.0
        %402 = vmatprep.subr.mxu0 0.0
        %403 = vmatpush1.msra.mxu0 0.0
        %404 = vmatprep.subr.mxu0 0.0
        %405 = vmatpush1.msra.mxu0 0.0
        %406 = vmatprep.subr.mxu0 0.0
        %407 = vmatpush1.msra.mxu0 0.0
        %408 = vmatprep.subr.mxu0 0.0
        %409 = vmatpush1.msra.mxu0 0.0
        %410 = vmatprep.subr.mxu0 0.0
        %411 = vmatpush1.msra.mxu0 0.0
        %412 = vmatprep.subr.mxu0 0.0
        %413 = vmatpush1.msra.mxu0 0.0
        %414 = vmatprep.subr.mxu0 0.0
        %415 = vmatpush1.msra.mxu0 0.0
        %416 = vmatprep.subr.mxu0 0.0
        %417 = vmatpush1.msra.mxu0 0.0
        %418 = vmatprep.subr.mxu0 0.0
        %419 = vmatpush1.msra.mxu0 0.0
        %420 = vmatprep.subr.mxu0 0.0
        %421 = vmatpush1.msra.mxu0 0.0
        %422 = vmatprep.subr.mxu0 0.0
        %423 = vmatpush1.msra.mxu0 0.0
        %424 = vmatprep.subr.mxu0 0.0
        %425 = vmatpush1.msra.mxu0 0.0
        %426 = vmatprep.mubr.f32.mxu0 0.0
        %427 = vmatmul.mubr.f32.gmra.mrb[0].mxu0 %v339
        %v428 = vpop.f32.mrb[0].mxu0
        %v429 = vadd.f32 0.0, %v428
        %v430 = vpop.f32.mrb[0].mxu0
        %v431 = vadd.f32 0.0, %v430
        %432 = vmatprep.mubr.f32.mxu0 0.0
        %433 = vmatmul.mubr.f32.gmra.mrb[0].mxu0 %v342
        %v434 = vpop.f32.mrb[0].mxu0
        %v435 = vadd.f32 0.0, %v434
        %v436 = vpop.f32.mrb[0].mxu0
        %v437 = vadd.f32 0.0, %v436
        %438 = vmatprep.mubr.f32.mxu0 0.0
        %439 = vmatmul.mubr.f32.gmra.mrb[0].mxu0 %v345
        %v440 = vpop.f32.mrb[0].mxu0
        %v441 = vadd.f32 0.0, %v440
        %v442 = vpop.f32.mrb[0].mxu0
        %v443 = vadd.f32 0.0, %v442
        %444 = vmatprep.mubr.f32.mxu0 0.0
        %445 = vmatmul.mubr.f32.gmra.mrb[0].mxu0 %v348
        %v446 = vpop.f32.mrb[0].mxu0
        %v447 = vadd.f32 0.0, %v446
        %v448 = vpop.f32.mrb[0].mxu0
        %v449 = vadd.f32 0.0, %v448
        %450 = vmatprep.mubr.f32.mxu0 0.0
        %451 = vmatmul.mubr.f32.gmra.mrb[0].mxu0 %v351
        %v452 = vpop.f32.mrb[0].mxu0
        %v453 = vadd.f32 0.0, %v452
        %v454 = vpop.f32.mrb[0].mxu0
        %v455 = vadd.f32 0.0, %v454
        %456 = vmatprep.mubr.f32.mxu0 0.0
        %457 = vmatmul.mubr.f32.gmra.mrb[0].mxu0 %v354
        %v458 = vpop.f32.mrb[0].mxu0
        %v459 = vadd.f32 0.0, %v458
        %v460 = vpop.f32.mrb[0].mxu0
        %v461 = vadd.f32 0.0, %v460
        %462 = vmatprep.mubr.f32.mxu0 0.0
        %463 = vmatmul.mubr.f32.gmra.mrb[0].mxu0 %v357
        %v464 = vpop.f32.mrb[0].mxu0
        %v465 = vadd.f32 0.0, %v464
        %v466 = vpop.f32.mrb[0].mxu0
        %v467 = vadd.f32 0.0, %v466
        %468 = vmatprep.mubr.f32.mxu0 0.0
        %469 = vmatmul.mubr.f32.gmra.mrb[0].mxu0 %v360
        %v470 = vpop.f32.mrb[0].mxu0
        %v471 = vadd.f32 0.0, %v470
        %v472 = vpop.f32.mrb[0].mxu0
        %v473 = vadd.f32 0.0, %v472
        %474 = vdwg.mxu0
        %v475 = vmul.f32 %v429, %v325
        %v476 = vmul.f32 %v431, %v326
        %v477 = vmul.f32 %v435, %v327
        %v478 = vmul.f32 %v437, %v328
        %v479 = vmul.f32 %v441, %v325
        %v480 = vmul.f32 %v443, %v326
        %v481 = vmul.f32 %v447, %v327
        %v482 = vmul.f32 %v449, %v328
        %v483 = vmul.f32 %v453, %v325
        %v484 = vmul.f32 %v455, %v326
        %v485 = vmul.f32 %v459, %v327
        %v486 = vmul.f32 %v461, %v328
        %v487 = vmul.f32 %v465, %v325
        %v488 = vmul.f32 %v467, %v326
        %v489 = vmul.f32 %v471, %v327
        %v490 = vmul.f32 %v473, %v328
        %v491 = vadd.f32 %v475, %v477
        %v492 = vrot.slane %v491, 4
        %v493 = vadd.f32 %v491, %v492
        %v494 = vrot.slane %v493, 2
        %v495 = vadd.f32 %v493, %v494
        %v496 = vrot.slane %v495, 1
        %v497 = vadd.f32 %v495, %v496
        %v498 = vadd.f32 %v476, %v478
        %v499 = vrot.slane %v498, 4
        %v500 = vadd.f32 %v498, %v499
        %v501 = vrot.slane %v500, 2
        %v502 = vadd.f32 %v500, %v501
        %v503 = vrot.slane %v502, 1
        %v504 = vadd.f32 %v502, %v503
        %v505 = vadd.f32 %v479, %v481
        %v506 = vrot.slane %v505, 4
        %v507 = vadd.f32 %v505, %v506
        %v508 = vrot.slane %v507, 2
        %v509 = vadd.f32 %v507, %v508
        %v510 = vrot.slane %v509, 1
        %v511 = vadd.f32 %v509, %v510
        %v512 = vadd.f32 %v480, %v482
        %v513 = vrot.slane %v512, 4
        %v514 = vadd.f32 %v512, %v513
        %v515 = vrot.slane %v514, 2
        %v516 = vadd.f32 %v514, %v515
        %v517 = vrot.slane %v516, 1
        %v518 = vadd.f32 %v516, %v517
        %v519 = vadd.f32 %v483, %v485
        %v520 = vrot.slane %v519, 4
        %v521 = vadd.f32 %v519, %v520
        %v522 = vrot.slane %v521, 2
        %v523 = vadd.f32 %v521, %v522
        %v524 = vrot.slane %v523, 1
        %v525 = vadd.f32 %v523, %v524
        %v526 = vadd.f32 %v484, %v486
        %v527 = vrot.slane %v526, 4
        %v528 = vadd.f32 %v526, %v527
        %v529 = vrot.slane %v528, 2
        %v530 = vadd.f32 %v528, %v529
        %v531 = vrot.slane %v530, 1
        %v532 = vadd.f32 %v530, %v531
        %v533 = vadd.f32 %v487, %v489
        %v534 = vrot.slane %v533, 4
        %v535 = vadd.f32 %v533, %v534
        %v536 = vrot.slane %v535, 2
        %v537 = vadd.f32 %v535, %v536
        %v538 = vrot.slane %v537, 1
        %v539 = vadd.f32 %v537, %v538
        %v540 = vadd.f32 %v488, %v490
        %v541 = vrot.slane %v540, 4
        %v542 = vadd.f32 %v540, %v541
        %v543 = vrot.slane %v542, 2
        %v544 = vadd.f32 %v542, %v543
        %v545 = vrot.slane %v544, 1
        %v546 = vadd.f32 %v544, %v545
        %v555 = vcombine.low %v497, %v504
        %v556 = vcombine.low %v511, %v518
        %v557 = vcombine.low %v525, %v532
        %v558 = vcombine.low %v539, %v546
        %v559 = vrot.slane %v556, 7
        %vm560 = vcmask 1041409
        %v561 = vsel %vm560, %v559, %v555
        %vm562 = vcmask 1045509
        %v563 = vsel %vm562, %v559, %v561
        %v564 = vrot.slane %v557, 6
        %vm565 = vcmask 1042434
        %v566 = vsel %vm565, %v564, %v563
        %vm567 = vcmask 1046534
        %v568 = vsel %vm567, %v564, %v566
        %v569 = vrot.slane %v558, 5
        %vm570 = vcmask 1043459
        %v571 = vsel %vm570, %v569, %v568
        %vm572 = vcmask 1047559
        %v573 = vsel %vm572, %v569, %v571
        %575 = vst [vmem:[%s176] sm:$0xff] %v573
        %s576 = sand.u32 %s92, 1
        %s577 = scalar_lea.sflag [#allocation3], %s576
        %s578 = sand.u32 %s92, 1
        %s579 = smul.addr %s578, 8
        %s580 = scalar_lea.vmem [#allocation2], %s579
        // Predicated region
        $region29: #{tpu_custom_call.1} parent=27 // pred_check
          %p581 = pneg %p102
        $region30: #{tpu_custom_call.1} parent=27 // pred_check_branch
          %583 = sbr.rel (%p581) target = $region32
        $region31: #{tpu_custom_call.1} parent=27 // pred_region
          %s584 = smul.u32 2, %s21
          %s586 = ssub.s32 128, 128
          %587 = vsyncadd %s577, %s586
          %s588 = smul.addr %s20, 2
          %s589 = sadd.s32 %s584, %s588
          %s590 = smul.addr %s589, 64
          %s591 = scalar_lea.hbm %s2, %s590
          %s593 = sshll.u32 %s580, 4
          %s594 = int_to_ptr.vmem [resolvable:$true] %s593
          %596 = dma.vmem_to_hbm [thread:$0]  %s594, 128, %s591, %s577
        $region32: #{tpu_custom_call.1} parent=27 // pred_fallthru
          _
      $region28: #{tpu_custom_call.1} parent=5 // pred_fallthru
        _
      %p597 = scmp.le.s32.totalorder 2, %s11
      // Predicated region
      $region33: #{tpu_custom_call.1} parent=5 // pred_check
        %p598 = pneg %p597
      $region34: #{tpu_custom_call.1} parent=5 // pred_check_branch
        %600 = sbr.rel (%p598) target = $region36
      $region35: #{tpu_custom_call.1} parent=5 // pred_region
        %s601 = ssub.s32 %s11, 2
        // Predicated region
        $region37: #{tpu_custom_call.1} parent=35 // pred_check
          %p602 = pneg %p108
        $region38: #{tpu_custom_call.1} parent=35 // pred_check_branch
          %604 = sbr.rel (%p602) target = $region40
        $region39: #{tpu_custom_call.1} parent=35 // pred_region
          %s605 = sand.u32 %s93, 1
          %s606 = scalar_lea.sflag [#allocation3], %s605
          %s607 = sand.u32 %s93, 1
          %s608 = smul.addr %s607, 8
          %s609 = scalar_lea.vmem [#allocation2], %s608
          %610 = dma.done %s606, 128
        $region40: #{tpu_custom_call.1} parent=35 // pred_fallthru
          _
      $region36: #{tpu_custom_call.1} parent=5 // pred_fallthru
        _
    $region6: #{tpu_custom_call.1} parent=1 // loop_footer
      %s15 = sadd.s32 1, %s11
    $region7: #{tpu_custom_call.1} parent=1 // loop_footer_branch
      %10 = sbr.rel target = $region3
    $region8: #{tpu_custom_call.1} parent=1 // loop_exit
      _
    %611 = vsyncpa [#allocation3], 1
    %s612 = scalar_lea.sflag [#allocation3], 1
    %613 = vsyncpa %s612, 1

</llo_original>
